<compile_context>
chip_gen: v7x
topology: tpu7x:2x2x1
jax: 0.10.0
libtpu: 0.0.40
codegen_flags: <defaults>
</compile_context>

<pallas_src>
import functools

import jax
import jax.numpy as jnp
from jax.experimental import pallas as pl
from jax.experimental.pallas import tpu as pltpu


def _round_up(n, m):
    return (n + m - 1) // m * m


def _mlp_kernel(x_ref, w_ref, b_ref, o_ref, *, in_dim, in_slab, hid_pad,
                out_dim, out_pad, compute_dtype):
    # x_ref:(TB, in_dim) f32 | w_ref:(in_slab + 2*hid_pad, L) compute_dtype
    # b_ref:(3, L) f32       | o_ref:(TB, out_dim) f32
    # Cast to the MXU dtype in-kernel (rides on the VPU underneath the x DMA).
    x = x_ref[...].astype(compute_dtype)

    # Static, tile-aligned views into the packed weight slab (zero-cost slices).
    w1 = w_ref[0:in_dim, 0:hid_pad]
    w2 = w_ref[in_slab:in_slab + hid_pad, 0:hid_pad]
    w3 = w_ref[in_slab + hid_pad:in_slab + 2 * hid_pad, 0:out_pad]

    b1 = b_ref[0:1, 0:hid_pad]
    b2 = b_ref[1:2, 0:hid_pad]
    b3 = b_ref[2:3, 0:out_pad]

    # Layer 1: Linear + ReLU (MXU matmul with f32 accumulate, f32 epilogue on VPU).
    h1 = jnp.dot(x, w1, preferred_element_type=jnp.float32)
    h1 = jnp.maximum(h1 + b1, 0.0)

    # Layer 2: Linear + ReLU.  (Zero-padded hidden cols stay exactly zero: ReLU(0)=0
    # and the corresponding weight rows are zero, so the padding is inert.)
    h2 = jnp.dot(h1.astype(compute_dtype), w2, preferred_element_type=jnp.float32)
    h2 = jnp.maximum(h2 + b2, 0.0)

    # Layer 3: Linear (no activation), then store only the real out_dim columns so
    # the HBM writeback is narrow.
    out = jnp.dot(h2.astype(compute_dtype), w3,
                  preferred_element_type=jnp.float32) + b3
    o_ref[...] = out[:, :out_dim].astype(o_ref.dtype)


def gto_dqn_forward(x, params, *, compute_dtype=jnp.bfloat16, batch_tile=4096):
    """GTO_DQN MLP forward pass in one Pallas TPU kernel.

    x: (B, input_dim) float32
    params: dict with w1 (in,64), b1 (1,64), w2 (64,64), b2 (1,64),
            w3 (64,out), b3 (1,out)   -- (in_features, out_features) layout,
            i.e. y = x @ W + b (== PyTorch x @ W.T with W of shape (out,in)).
    returns: (B, output_dim) float32
    """
    B, in_dim = x.shape
    hid = params["w1"].shape[1]
    out_dim = params["w3"].shape[1]

    # Lane-dense padded dims for the VMEM-resident weight slab.
    hid_pad = _round_up(hid, 128)
    out_pad = _round_up(out_dim, 128)
    L = max(hid_pad, out_pad)
    # bf16 second-minor tile is 16 rows; keep the slab section offsets 16-aligned.
    in_slab = _round_up(in_dim, 16)

    # Batch tile: multiple of 8, capped for small batches.  If the whole batch
    # would be one grid step, split it so the "parallel" axis spans both v7x TCs.
    TB = min(_round_up(batch_tile, 8), _round_up(B, 8))
    if pl.cdiv(B, TB) < 2 and B >= 16:
        TB = _round_up(pl.cdiv(_round_up(B, 8), 2), 8)
    grid = (pl.cdiv(B, TB),)

    # Pack all three (zero-padded) weight matrices into one lane-dense bf16 slab.
    w_rows = in_slab + 2 * hid_pad
    w_slab = jnp.zeros((w_rows, L), compute_dtype)
    w_slab = w_slab.at[:in_dim, :hid].set(params["w1"].astype(compute_dtype))
    w_slab = w_slab.at[in_slab:in_slab + hid, :hid].set(
        params["w2"].astype(compute_dtype))
    w_slab = w_slab.at[in_slab + hid_pad:in_slab + hid_pad + hid, :out_dim].set(
        params["w3"].astype(compute_dtype))

    # Biases stay f32 (bias add / ReLU done in f32), packed into one tiny array.
    b_slab = jnp.zeros((3, L), jnp.float32)
    b_slab = b_slab.at[0, :hid].set(params["b1"].reshape(-1).astype(jnp.float32))
    b_slab = b_slab.at[1, :hid].set(params["b2"].reshape(-1).astype(jnp.float32))
    b_slab = b_slab.at[2, :out_dim].set(
        params["b3"].reshape(-1).astype(jnp.float32))

    kernel = functools.partial(_mlp_kernel, in_dim=in_dim, in_slab=in_slab,
                               hid_pad=hid_pad, out_dim=out_dim, out_pad=out_pad,
                               compute_dtype=compute_dtype)

    return pl.pallas_call(
        kernel,
        out_shape=jax.ShapeDtypeStruct((B, out_dim), jnp.float32),
        grid=grid,
        in_specs=[
            pl.BlockSpec((TB, in_dim), lambda i: (i, 0)),   # batch-tiled raw x
            pl.BlockSpec((w_rows, L), lambda i: (0, 0)),    # resident weight slab
            pl.BlockSpec((3, L), lambda i: (0, 0)),         # resident bias slab
        ],
        out_specs=pl.BlockSpec((TB, out_dim), lambda i: (i, 0)),
        compiler_params=pltpu.CompilerParams(
            dimension_semantics=("parallel",),              # megacore on v7x
            vmem_limit_bytes=64 << 20),                     # v5e: 16 MiB default
    )(x, w_slab, b_slab)


def init_params(key, input_dim, output_dim, hidden=64):
    """Deterministic PyTorch-style (uniform +/- 1/sqrt(fan_in)) initialization."""
    ks = jax.random.split(key, 6)

    def lin(kw, kb, fan_in, fan_out):
        bound = 1.0 / jnp.sqrt(fan_in)
        w = jax.random.uniform(kw, (fan_in, fan_out), jnp.float32, -bound, bound)
        b = jax.random.uniform(kb, (1, fan_out), jnp.float32, -bound, bound)
        return w, b

    w1, b1 = lin(ks[0], ks[1], input_dim, hidden)
    w2, b2 = lin(ks[2], ks[3], hidden, hidden)
    w3, b3 = lin(ks[4], ks[5], hidden, output_dim)
    return {"w1": w1, "b1": b1, "w2": w2, "b2": b2, "w3": w3, "b3": b3}


def _reference(x, p, compute_dtype=jnp.float32):
    """Pure-JAX reference; compute_dtype mirrors the kernel's MXU operand dtype."""
    cd = compute_dtype
    h1 = jnp.maximum(jnp.dot(x.astype(cd), p["w1"].astype(cd),
                             preferred_element_type=jnp.float32) + p["b1"], 0.0)
    h2 = jnp.maximum(jnp.dot(h1.astype(cd), p["w2"].astype(cd),
                             preferred_element_type=jnp.float32) + p["b2"], 0.0)
    return jnp.dot(h2.astype(cd), p["w3"].astype(cd),
                   preferred_element_type=jnp.float32) + p["b3"]


if __name__ == "__main__":
    key = jax.random.PRNGKey(0)
    k_x, k_p = jax.random.split(key)

    batch = 8
    input_dim = 32   # e.g. poker state feature vector
    output_dim = 16  # e.g. number of discrete actions

    x = jax.random.normal(k_x, (batch, input_dim), dtype=jnp.float32)
    params = init_params(k_p, input_dim, output_dim)

    fwd = jax.jit(gto_dqn_forward)
    out = jax.block_until_ready(fwd(x, params))
    assert out.shape == (batch, output_dim)

    # Check against a bf16-operand reference (same arithmetic as the kernel) ...
    ref_bf16 = _reference(x, params, jnp.bfloat16)
    assert jnp.allclose(out, ref_bf16, atol=2e-3, rtol=2e-2), (
        float(jnp.max(jnp.abs(out - ref_bf16))))
    # ... and loosely against the full-f32 reference (bf16 quantization only).
    ref_f32 = _reference(x, params, jnp.float32)
    assert jnp.allclose(out, ref_f32, atol=5e-2, rtol=5e-2), (
        float(jnp.max(jnp.abs(out - ref_f32))))

    # Multi-step grid + ragged tail (last block has masked out-of-bounds rows).
    x50 = jax.random.normal(jax.random.PRNGKey(1), (50, input_dim), jnp.float32)
    out50 = jax.block_until_ready(jax.jit(gto_dqn_forward)(x50, params))
    assert out50.shape == (50, output_dim)
    assert jnp.allclose(out50, _reference(x50, params, jnp.bfloat16),
                        atol=2e-3, rtol=2e-2)

    # Tiny, non-multiple-of-8 batch (single partial block).
    x3 = jax.random.normal(jax.random.PRNGKey(2), (3, input_dim), jnp.float32)
    out3 = jax.block_until_ready(jax.jit(gto_dqn_forward)(x3, params))
    assert out3.shape == (3, output_dim)
    assert jnp.allclose(out3, _reference(x3, params, jnp.bfloat16),
                        atol=2e-3, rtol=2e-2)

    print("KERNEL_OK")
</pallas_src>

<mosaic_0001>
module attributes {stable_mosaic.version = 11 : i64} {
  func.func @_mlp_kernel(%arg0: i32, %arg1: memref<8x32xf32, #tpu.memory_space<vmem>>, %arg2: memref<288x128xbf16, #tpu.memory_space<vmem>>, %arg3: memref<3x128xf32, #tpu.memory_space<vmem>>, %arg4: memref<8x16xf32, #tpu.memory_space<vmem>>) attributes {dimension_semantics = [#tpu.dimension_semantics<parallel>], iteration_bounds = array<i64: 1>, scalar_prefetch = 0 : i64, scratch_operands = 0 : i64, tpu.core_type = #tpu.core_type<tc>, window_params = [{transform_indices = @transform_0, window_bounds = array<i64: 8, 32>}, {pipeline_mode = #tpu.pipeline_mode<synchronous>, transform_indices = @transform_1, window_bounds = array<i64: 288, 128>}, {pipeline_mode = #tpu.pipeline_mode<synchronous>, transform_indices = @transform_2, window_bounds = array<i64: 3, 128>}, {transform_indices = @transform_3, window_bounds = array<i64: 8, 16>}]} {
    %c0 = arith.constant 0 : index
    %c0_0 = arith.constant 0 : index
    %0 = vector.load %arg1[%c0, %c0_0] : memref<8x32xf32, #tpu.memory_space<vmem>>, vector<8x32xf32>
    %1 = arith.truncf %0 : vector<8x32xf32> to vector<8x32xbf16>
    %c0_1 = arith.constant 0 : index
    %c0_2 = arith.constant 0 : index
    %2 = vector.load %arg2[%c0_1, %c0_2] : memref<288x128xbf16, #tpu.memory_space<vmem>>, vector<32x128xbf16>
    %c32 = arith.constant 32 : index
    %c0_3 = arith.constant 0 : index
    %3 = vector.load %arg2[%c32, %c0_3] : memref<288x128xbf16, #tpu.memory_space<vmem>>, vector<128x128xbf16>
    %c160 = arith.constant 160 : index
    %c0_4 = arith.constant 0 : index
    %4 = vector.load %arg2[%c160, %c0_4] : memref<288x128xbf16, #tpu.memory_space<vmem>>, vector<128x128xbf16>
    %c0_5 = arith.constant 0 : index
    %c0_6 = arith.constant 0 : index
    %5 = vector.load %arg3[%c0_5, %c0_6] : memref<3x128xf32, #tpu.memory_space<vmem>>, vector<1x128xf32>
    %c1 = arith.constant 1 : index
    %c0_7 = arith.constant 0 : index
    %6 = vector.load %arg3[%c1, %c0_7] : memref<3x128xf32, #tpu.memory_space<vmem>>, vector<1x128xf32>
    %c2 = arith.constant 2 : index
    %c0_8 = arith.constant 0 : index
    %7 = vector.load %arg3[%c2, %c0_8] : memref<3x128xf32, #tpu.memory_space<vmem>>, vector<1x128xf32>
    %cst = arith.constant dense<0.000000e+00> : vector<8x128xf32>
    %8 = tpu.matmul %1, %2, %cst {dimension_numbers = #tpu.dot_dimension_numbers<[1], [0], [0], [1], [0, 0, 1, 1], [], []>} : vector<8x32xbf16>, vector<32x128xbf16>, vector<8x128xf32> -> vector<8x128xf32>
    %9 = vector.broadcast %5 : vector<1x128xf32> to vector<8x128xf32>
    %10 = arith.addf %8, %9 : vector<8x128xf32>
    %cst_9 = arith.constant 0.000000e+00 : f32
    %11 = vector.broadcast %cst_9 : f32 to vector<8x128xf32>
    %12 = arith.maximumf %10, %11 : vector<8x128xf32>
    %13 = arith.truncf %12 : vector<8x128xf32> to vector<8x128xbf16>
    %cst_10 = arith.constant dense<0.000000e+00> : vector<8x128xf32>
    %14 = tpu.matmul %13, %3, %cst_10 {dimension_numbers = #tpu.dot_dimension_numbers<[1], [0], [0], [1], [0, 0, 1, 1], [], []>} : vector<8x128xbf16>, vector<128x128xbf16>, vector<8x128xf32> -> vector<8x128xf32>
    %15 = vector.broadcast %6 : vector<1x128xf32> to vector<8x128xf32>
    %16 = arith.addf %14, %15 : vector<8x128xf32>
    %cst_11 = arith.constant 0.000000e+00 : f32
    %17 = vector.broadcast %cst_11 : f32 to vector<8x128xf32>
    %18 = arith.maximumf %16, %17 : vector<8x128xf32>
    %19 = arith.truncf %18 : vector<8x128xf32> to vector<8x128xbf16>
    %cst_12 = arith.constant dense<0.000000e+00> : vector<8x128xf32>
    %20 = tpu.matmul %19, %4, %cst_12 {dimension_numbers = #tpu.dot_dimension_numbers<[1], [0], [0], [1], [0, 0, 1, 1], [], []>} : vector<8x128xbf16>, vector<128x128xbf16>, vector<8x128xf32> -> vector<8x128xf32>
    %21 = vector.broadcast %7 : vector<1x128xf32> to vector<8x128xf32>
    %22 = arith.addf %20, %21 : vector<8x128xf32>
    %23 = vector.extract_strided_slice %22 {offsets = [0, 0], sizes = [8, 16], strides = [1, 1]} : vector<8x128xf32> to vector<8x16xf32>
    %c0_13 = arith.constant 0 : index
    %c0_14 = arith.constant 0 : index
    %24 = vector.load %arg4[%c0_13, %c0_14] : memref<8x16xf32, #tpu.memory_space<vmem>>, vector<8x16xf32>
    tpu.vector_store %arg4[%c0_13, %c0_14], %23 {strides = array<i32>} : memref<8x16xf32, #tpu.memory_space<vmem>>, vector<8x16xf32>,
    return
  }
  func.func @transform_0(%arg0: i32) -> (i32, i32) {
    %c0_i32 = arith.constant 0 : i32
    %c0_i32_0 = arith.constant 0 : i32
    return %arg0, %c0_i32 : i32, i32
  }
  func.func @transform_1(%arg0: i32) -> (i32, i32) {
    %c0_i32 = arith.constant 0 : i32
    %c0_i32_0 = arith.constant 0 : i32
    %c0_i32_1 = arith.constant 0 : i32
    return %c0_i32, %c0_i32_0 : i32, i32
  }
  func.func @transform_2(%arg0: i32) -> (i32, i32) {
    %c0_i32 = arith.constant 0 : i32
    %c0_i32_0 = arith.constant 0 : i32
    %c0_i32_1 = arith.constant 0 : i32
    return %c0_i32, %c0_i32_0 : i32, i32
  }
  func.func @transform_3(%arg0: i32) -> (i32, i32) {
    %c0_i32 = arith.constant 0 : i32
    %c0_i32_0 = arith.constant 0 : i32
    return %arg0, %c0_i32 : i32, i32
  }
}

</mosaic_0001>

<llo_original>
// kernel: gto_dqn_forward.1
$region0: #{gto_dqn_forward.1}
  #allocation0 [shape = 'u32[]', space=smem, size = 0x4, offset = 0x4, fixed_abs, tag = 'smem constant byte address 0x4 - core index']
  #allocation1 [shape = 'u32[144,128]{1,0:T(1,128)}', space=vmem, size = 0x12000, scoped, tag = 'internal scratch']
  %s0 = inlined_call_operand.hbm [shape: f32[8,32], index: 0, kind: input, shape index: {}]
  %s1 = inlined_call_operand.hbm [shape: bf16[288,128], index: 1, kind: input, shape index: {}]
  %s2 = inlined_call_operand.hbm [shape: f32[3,128], index: 2, kind: input, shape index: {}]
  %s3 = inlined_call_operand.hbm [shape: f32[8,16], index: 3, kind: output, shape index: {}]
  %s4 = sld [smem:[#allocation0]]
  $region34: #{gto_dqn_forward.1} parent=0
    _
  %s6 = ssub.s32 1, %s4
  %s7 = scalar_select 0, %s6, %s4
  $region1: #{gto_dqn_forward.1} parent=0
    #allocation2 [shape = 'u8[4096]{0}', space=vmem, size = 0x1000, scoped, tag = 'input window, operand 0, single buffered']
    #allocation3 [shape = 's32[1]{0}', space=sflag, size = 0x4, scoped, tag = 'scoped memory for gto_dqn_forward.1']
    #allocation4 [shape = 's32[1]{0}', space=sflag, size = 0x4, scoped, tag = 'scoped memory for gto_dqn_forward.1']
    #allocation5 [shape = 'u8[73728]{0}', space=vmem, size = 0x12000, scoped, tag = 'input window, operand 1, single buffered']
    #allocation6 [shape = 's32[1]{0}', space=sflag, size = 0x4, scoped, tag = 'scoped memory for gto_dqn_forward.1']
    #allocation7 [shape = 'u8[2048]{0}', space=vmem, size = 0x800, scoped, tag = 'input window, operand 2, single buffered']
    #allocation8 [shape = 'u8[4096]{0}', space=vmem, size = 0x1000, scoped, tag = 'output window, operand 0, single buffered']
    %8 = vsyncpa [#allocation3], 0
    %9 = vsyncpa [#allocation6], 0
    %10 = vsyncpa [#allocation4], 0
    // Predicated region
    $region2: #{gto_dqn_forward.1} parent=1 // pred_check
      _
    $region3: #{gto_dqn_forward.1} parent=1 // pred_check_branch
      %12 = sbr.rel (0) target = $region5
    $region4: #{gto_dqn_forward.1} parent=1 // pred_region
      %s14 = ssub.s32 128, 128
      %15 = vsyncadd [#allocation3], %s14
      %s17 = sshll.u32 [#allocation2], 4
      %s18 = int_to_ptr.vmem [resolvable:$true] %s17
      %20 = dma.hbm_to_vmem [thread:$0]  %s0, 128, %s18, [#allocation3]
    $region5: #{gto_dqn_forward.1} parent=1 // pred_fallthru
      _
    // Predicated region
    $region6: #{gto_dqn_forward.1} parent=1 // pred_check
      _
    $region7: #{gto_dqn_forward.1} parent=1 // pred_check_branch
      %22 = sbr.rel (0) target = $region9
    $region8: #{gto_dqn_forward.1} parent=1 // pred_region
      %s24 = ssub.s32 2304, 2304
      %25 = vsyncadd [#allocation6], %s24
      %s26 = sshll.u32 [#allocation5], 4
      %s27 = int_to_ptr.vmem [resolvable:$true] %s26
      %32 = dma.hbm_to_vmem [thread:$0]  %s1, 2304, %s27, [#allocation6], 64, 64, 4
    $region9: #{gto_dqn_forward.1} parent=1 // pred_fallthru
      _
    // Predicated region
    $region10: #{gto_dqn_forward.1} parent=1 // pred_check
      _
    $region11: #{gto_dqn_forward.1} parent=1 // pred_check_branch
      %34 = sbr.rel (0) target = $region13
    $region12: #{gto_dqn_forward.1} parent=1 // pred_region
      %s36 = ssub.s32 64, 64
      %37 = vsyncadd [#allocation6], %s36
      %s39 = sshll.u32 [#allocation7], 4
      %s40 = int_to_ptr.vmem [resolvable:$true] %s39
      %42 = dma.hbm_to_vmem [thread:$0]  %s2, 64, %s40, [#allocation6]
    $region13: #{gto_dqn_forward.1} parent=1 // pred_fallthru
      _
    // Predicated region
    $region14: #{gto_dqn_forward.1} parent=1 // pred_check
      _
    $region15: #{gto_dqn_forward.1} parent=1 // pred_check_branch
      %44 = sbr.rel (0) target = $region17
    $region16: #{gto_dqn_forward.1} parent=1 // pred_region
      %45 = dma.done [#allocation3], 128
    $region17: #{gto_dqn_forward.1} parent=1 // pred_fallthru
      _
    // Predicated region
    $region18: #{gto_dqn_forward.1} parent=1 // pred_check
      _
    $region19: #{gto_dqn_forward.1} parent=1 // pred_check_branch
      %47 = sbr.rel (0) target = $region21
    $region20: #{gto_dqn_forward.1} parent=1 // pred_region
      %48 = dma.done [#allocation6], 2304
    $region21: #{gto_dqn_forward.1} parent=1 // pred_fallthru
      _
    // Predicated region
    $region22: #{gto_dqn_forward.1} parent=1 // pred_check
      _
    $region23: #{gto_dqn_forward.1} parent=1 // pred_check_branch
      %50 = sbr.rel (0) target = $region25
    $region24: #{gto_dqn_forward.1} parent=1 // pred_region
      %51 = dma.done [#allocation6], 64
    $region25: #{gto_dqn_forward.1} parent=1 // pred_fallthru
      _
    %v53 = vld [vmem:[#allocation2] sm:$0xff]
    %v54 = vpack.c.bf16 %v53, %v53
    %v55 = vld [vmem:[#allocation5] sm:$0xf]
    %v56 = vld [vmem:[#allocation5 + $0x4] sm:$0xf]
    %v57 = vld [vmem:[#allocation5 + $0x8] sm:$0xf]
    %v58 = vld [vmem:[#allocation5 + $0xc] sm:$0xf]
    %v59 = vld [vmem:[#allocation5 + $0x10] sm:$0xf]
    %v60 = vld [vmem:[#allocation5 + $0x14] sm:$0xf]
    %v61 = vld [vmem:[#allocation5 + $0x18] sm:$0xf]
    %v62 = vld [vmem:[#allocation5 + $0x1c] sm:$0xf]
    %v63 = vld [vmem:[#allocation5 + $0x20] sm:$0xf]
    %v64 = vld [vmem:[#allocation5 + $0x24] sm:$0xf]
    %v65 = vld [vmem:[#allocation5 + $0x28] sm:$0xf]
    %v66 = vld [vmem:[#allocation5 + $0x2c] sm:$0xf]
    %v67 = vld [vmem:[#allocation5 + $0x30] sm:$0xf]
    %v68 = vld [vmem:[#allocation5 + $0x34] sm:$0xf]
    %v69 = vld [vmem:[#allocation5 + $0x38] sm:$0xf]
    %v70 = vld [vmem:[#allocation5 + $0x3c] sm:$0xf]
    %v71 = vld [vmem:[#allocation5 + $0x40] sm:$0xf]
    %v72 = vld [vmem:[#allocation5 + $0x44] sm:$0xf]
    %v73 = vld [vmem:[#allocation5 + $0x48] sm:$0xf]
    %v74 = vld [vmem:[#allocation5 + $0x4c] sm:$0xf]
    %v75 = vld [vmem:[#allocation5 + $0x50] sm:$0xf]
    %v76 = vld [vmem:[#allocation5 + $0x54] sm:$0xf]
    %v77 = vld [vmem:[#allocation5 + $0x58] sm:$0xf]
    %v78 = vld [vmem:[#allocation5 + $0x5c] sm:$0xf]
    %v79 = vld [vmem:[#allocation5 + $0x60] sm:$0xf]
    %v80 = vld [vmem:[#allocation5 + $0x64] sm:$0xf]
    %v81 = vld [vmem:[#allocation5 + $0x68] sm:$0xf]
    %v82 = vld [vmem:[#allocation5 + $0x6c] sm:$0xf]
    %v83 = vld [vmem:[#allocation5 + $0x70] sm:$0xf]
    %v84 = vld [vmem:[#allocation5 + $0x74] sm:$0xf]
    %v85 = vld [vmem:[#allocation5 + $0x78] sm:$0xf]
    %v86 = vld [vmem:[#allocation5 + $0x7c] sm:$0xf]
    %v87 = vld [vmem:[#allocation5 + $0x80] sm:$0xf]
    %v88 = vld [vmem:[#allocation5 + $0x84] sm:$0xf]
    %v89 = vld [vmem:[#allocation5 + $0x88] sm:$0xf]
    %v90 = vld [vmem:[#allocation5 + $0x8c] sm:$0xf]
    %v91 = vld [vmem:[#allocation7] sm:$0x1]
    %v92 = vld [vmem:[#allocation7 + $0x1] sm:$0x1]
    %v93 = vld [vmem:[#allocation7 + $0x2] sm:$0x1]
    %v94 = vlaneseq
    %v95 = vshrl.u32 %v94, 7
    %v96 = vsub.s32 0, %v95
    %v97 = vrot.slane %v91, %v96
    %v102 = vunpack.c.l.b16 %v55
    %v103 = vunpack.c.l.b16 %v56
    %v104 = vunpack.c.l.b16 %v57
    %v105 = vunpack.c.l.b16 %v58
    %v106 = vpack.c.b16 %v103, %v102
    %v107 = vpack.c.b16 %v105, %v104
    %vm110 = vcmask 261120
    %v112 = vsel %vm110, %v54, 0
    %114 = vmatprep.subr.bf16.mxu0 0
    %115 = vmatpush1.bf16.msra.mxu0 %v106
    %116 = vmatprep.subr.bf16.mxu0 0
    %117 = vmatpush1.bf16.msra.mxu0 %v107
    %118 = vmatprep.subr.bf16.mxu0 0
    %119 = vmatpush1.bf16.msra.mxu0 0
    %120 = vmatprep.subr.bf16.mxu0 0
    %121 = vmatpush1.bf16.msra.mxu0 0
    %122 = vmatprep.subr.bf16.mxu0 0
    %123 = vmatpush1.bf16.msra.mxu0 0
    %124 = vmatprep.subr.bf16.mxu0 0
    %125 = vmatpush1.bf16.msra.mxu0 0
    %126 = vmatprep.subr.bf16.mxu0 0
    %127 = vmatpush1.bf16.msra.mxu0 0
    %128 = vmatprep.subr.bf16.mxu0 0
    %129 = vmatpush1.bf16.msra.mxu0 0
    %130 = vmatprep.subr.bf16.mxu0 0
    %131 = vmatpush1.bf16.msra.mxu0 0
    %132 = vmatprep.subr.bf16.mxu0 0
    %133 = vmatpush1.bf16.msra.mxu0 0
    %134 = vmatprep.subr.bf16.mxu0 0
    %135 = vmatpush1.bf16.msra.mxu0 0
    %136 = vmatprep.subr.bf16.mxu0 0
    %137 = vmatpush1.bf16.msra.mxu0 0
    %138 = vmatprep.subr.bf16.mxu0 0
    %139 = vmatpush1.bf16.msra.mxu0 0
    %140 = vmatprep.subr.bf16.mxu0 0
    %141 = vmatpush1.bf16.msra.mxu0 0
    %142 = vmatprep.subr.bf16.mxu0 0
    %143 = vmatpush1.bf16.msra.mxu0 0
    %144 = vmatprep.subr.bf16.mxu0 0
    %145 = vmatpush1.bf16.msra.mxu0 0
    %146 = vmatprep.mubr.bf16.mxu0 0
    %147 = vmatmul.mubr.bf16.gmra.mrb[0].mxu0 %v112
    %v148 = vpop.f32.mrb[0].mxu0
    %v149 = vadd.f32 %v97, %v148
    %v150 = vpop.f32.mrb[0].mxu0
    %v151 = vpop.f32.mrb[0].mxu0
    %v152 = vpop.f32.mrb[0].mxu0
    %153 = vdwg.mxu0
    %v154 = vmax.f32 %v149, 0.0
    %v155 = vpack.c.bf16 %v154, %v154
    %v156 = vlaneseq
    %v157 = vshrl.u32 %v156, 7
    %v158 = vsub.s32 0, %v157
    %v159 = vrot.slane %v92, %v158
    %v176 = vunpack.c.l.b16 %v59
    %v177 = vunpack.c.l.b16 %v60
    %v178 = vunpack.c.l.b16 %v61
    %v179 = vunpack.c.l.b16 %v62
    %v180 = vunpack.c.l.b16 %v63
    %v181 = vunpack.c.l.b16 %v64
    %v182 = vunpack.c.l.b16 %v65
    %v183 = vunpack.c.l.b16 %v66
    %v184 = vunpack.c.l.b16 %v67
    %v185 = vunpack.c.l.b16 %v68
    %v186 = vunpack.c.l.b16 %v69
    %v187 = vunpack.c.l.b16 %v70
    %v188 = vunpack.c.l.b16 %v71
    %v189 = vunpack.c.l.b16 %v72
    %v190 = vunpack.c.l.b16 %v73
    %v191 = vunpack.c.l.b16 %v74
    %v192 = vpack.c.b16 %v177, %v176
    %v193 = vpack.c.b16 %v179, %v178
    %v194 = vpack.c.b16 %v181, %v180
    %v195 = vpack.c.b16 %v183, %v182
    %v196 = vpack.c.b16 %v185, %v184
    %v197 = vpack.c.b16 %v187, %v186
    %v198 = vpack.c.b16 %v189, %v188
    %v199 = vpack.c.b16 %v191, %v190
    %208 = vmatprep.subr.bf16.mxu0 0
    %209 = vmatpush1.bf16.msra.mxu0 %v192
    %210 = vmatprep.subr.bf16.mxu0 0
    %211 = vmatpush1.bf16.msra.mxu0 %v193
    %212 = vmatprep.subr.bf16.mxu0 0
    %213 = vmatpush1.bf16.msra.mxu0 %v194
    %214 = vmatprep.subr.bf16.mxu0 0
    %215 = vmatpush1.bf16.msra.mxu0 %v195
    %216 = vmatprep.subr.bf16.mxu0 0
    %217 = vmatpush1.bf16.msra.mxu0 %v196
    %218 = vmatprep.subr.bf16.mxu0 0
    %219 = vmatpush1.bf16.msra.mxu0 %v197
    %220 = vmatprep.subr.bf16.mxu0 0
    %221 = vmatpush1.bf16.msra.mxu0 %v198
    %222 = vmatprep.subr.bf16.mxu0 0
    %223 = vmatpush1.bf16.msra.mxu0 %v199
    %224 = vmatprep.subr.bf16.mxu0 0
    %225 = vmatpush1.bf16.msra.mxu0 0
    %226 = vmatprep.subr.bf16.mxu0 0
    %227 = vmatpush1.bf16.msra.mxu0 0
    %228 = vmatprep.subr.bf16.mxu0 0
    %229 = vmatpush1.bf16.msra.mxu0 0
    %230 = vmatprep.subr.bf16.mxu0 0
    %231 = vmatpush1.bf16.msra.mxu0 0
    %232 = vmatprep.subr.bf16.mxu0 0
    %233 = vmatpush1.bf16.msra.mxu0 0
    %234 = vmatprep.subr.bf16.mxu0 0
    %235 = vmatpush1.bf16.msra.mxu0 0
    %236 = vmatprep.subr.bf16.mxu0 0
    %237 = vmatpush1.bf16.msra.mxu0 0
    %238 = vmatprep.subr.bf16.mxu0 0
    %239 = vmatpush1.bf16.msra.mxu0 0
    %240 = vmatprep.mubr.bf16.mxu0 0
    %241 = vmatmul.mubr.bf16.gmra.mrb[0].mxu0 %v155
    %v242 = vpop.f32.mrb[0].mxu0
    %v243 = vadd.f32 %v159, %v242
    %v244 = vpop.f32.mrb[0].mxu0
    %v245 = vpop.f32.mrb[0].mxu0
    %v246 = vpop.f32.mrb[0].mxu0
    %247 = vdwg.mxu0
    %v248 = vmax.f32 %v243, 0.0
    %v249 = vpack.c.bf16 %v248, %v248
    %v250 = vlaneseq
    %v251 = vshrl.u32 %v250, 7
    %v252 = vsub.s32 0, %v251
    %v253 = vrot.slane %v93, %v252
    %v270 = vunpack.c.l.b16 %v75
    %v271 = vunpack.c.l.b16 %v76
    %v272 = vunpack.c.l.b16 %v77
    %v273 = vunpack.c.l.b16 %v78
    %v274 = vunpack.c.l.b16 %v79
    %v275 = vunpack.c.l.b16 %v80
    %v276 = vunpack.c.l.b16 %v81
    %v277 = vunpack.c.l.b16 %v82
    %v278 = vunpack.c.l.b16 %v83
    %v279 = vunpack.c.l.b16 %v84
    %v280 = vunpack.c.l.b16 %v85
    %v281 = vunpack.c.l.b16 %v86
    %v282 = vunpack.c.l.b16 %v87
    %v283 = vunpack.c.l.b16 %v88
    %v284 = vunpack.c.l.b16 %v89
    %v285 = vunpack.c.l.b16 %v90
    %v286 = vpack.c.b16 %v271, %v270
    %v287 = vpack.c.b16 %v273, %v272
    %v288 = vpack.c.b16 %v275, %v274
    %v289 = vpack.c.b16 %v277, %v276
    %v290 = vpack.c.b16 %v279, %v278
    %v291 = vpack.c.b16 %v281, %v280
    %v292 = vpack.c.b16 %v283, %v282
    %v293 = vpack.c.b16 %v285, %v284
    %302 = vmatprep.subr.bf16.mxu0 0
    %303 = vmatpush1.bf16.msra.mxu0 %v286
    %304 = vmatprep.subr.bf16.mxu0 0
    %305 = vmatpush1.bf16.msra.mxu0 %v287
    %306 = vmatprep.subr.bf16.mxu0 0
    %307 = vmatpush1.bf16.msra.mxu0 %v288
    %308 = vmatprep.subr.bf16.mxu0 0
    %309 = vmatpush1.bf16.msra.mxu0 %v289
    %310 = vmatprep.subr.bf16.mxu0 0
    %311 = vmatpush1.bf16.msra.mxu0 %v290
    %312 = vmatprep.subr.bf16.mxu0 0
    %313 = vmatpush1.bf16.msra.mxu0 %v291
    %314 = vmatprep.subr.bf16.mxu0 0
    %315 = vmatpush1.bf16.msra.mxu0 %v292
    %316 = vmatprep.subr.bf16.mxu0 0
    %317 = vmatpush1.bf16.msra.mxu0 %v293
    %318 = vmatprep.subr.bf16.mxu0 0
    %319 = vmatpush1.bf16.msra.mxu0 0
    %320 = vmatprep.subr.bf16.mxu0 0
    %321 = vmatpush1.bf16.msra.mxu0 0
    %322 = vmatprep.subr.bf16.mxu0 0
    %323 = vmatpush1.bf16.msra.mxu0 0
    %324 = vmatprep.subr.bf16.mxu0 0
    %325 = vmatpush1.bf16.msra.mxu0 0
    %326 = vmatprep.subr.bf16.mxu0 0
    %327 = vmatpush1.bf16.msra.mxu0 0
    %328 = vmatprep.subr.bf16.mxu0 0
    %329 = vmatpush1.bf16.msra.mxu0 0
    %330 = vmatprep.subr.bf16.mxu0 0
    %331 = vmatpush1.bf16.msra.mxu0 0
    %332 = vmatprep.subr.bf16.mxu0 0
    %333 = vmatpush1.bf16.msra.mxu0 0
    %334 = vmatprep.mubr.bf16.mxu0 0
    %335 = vmatmul.mubr.bf16.gmra.mrb[0].mxu0 %v249
    %v336 = vpop.f32.mrb[0].mxu0
    %v337 = vadd.f32 %v253, %v336
    %v338 = vpop.f32.mrb[0].mxu0
    %v339 = vpop.f32.mrb[0].mxu0
    %v340 = vpop.f32.mrb[0].mxu0
    %341 = vdwg.mxu0
    %vm342 = vcmask 130048
    %343 = vst.msk [vmem:[#allocation8] sm:$0xff] %vm342, %v337
    // Predicated region
    $region26: #{gto_dqn_forward.1} parent=1 // pred_check
      _
    $region27: #{gto_dqn_forward.1} parent=1 // pred_check_branch
      %345 = sbr.rel (0) target = $region29
    $region28: #{gto_dqn_forward.1} parent=1 // pred_region
      %s347 = ssub.s32 128, 128
      %348 = vsyncadd [#allocation4], %s347
      %s350 = sshll.u32 [#allocation8], 4
      %s351 = int_to_ptr.vmem [resolvable:$true] %s350
      %353 = dma.vmem_to_hbm [thread:$0]  %s351, 128, %s3, [#allocation4]
    $region29: #{gto_dqn_forward.1} parent=1 // pred_fallthru
      _
    // Predicated region
    $region30: #{gto_dqn_forward.1} parent=1 // pred_check
      _
    $region31: #{gto_dqn_forward.1} parent=1 // pred_check_branch
      %355 = sbr.rel (0) target = $region33
    $region32: #{gto_dqn_forward.1} parent=1 // pred_region
      %356 = dma.done [#allocation4], 128
    $region33: #{gto_dqn_forward.1} parent=1 // pred_fallthru
      _
    %357 = vsyncpa [#allocation3], 1
    %358 = vsyncpa [#allocation6], 1
    %359 = vsyncpa [#allocation4], 1

</llo_original>
